<compile_context>
chip_gen: v7x
topology: tpu7x:2x2x1
jax: 0.10.0
libtpu: 0.0.40
codegen_flags: <defaults>
</compile_context>

<pallas_src>
import functools

import jax
import jax.numpy as jnp
import numpy as np
from jax.experimental import pallas as pl
from jax.experimental.pallas import tpu as pltpu


def _periodic_pad_kernel(x_ref, o_ref, *, pad):
    # x_ref: (Nb, Cb, H, W)    o_ref: (Nb, Cb, H + 2p, W + 2p)
    p = pad
    x = x_ref[...]
    W = x.shape[-1]
    Wo = W + 2 * p

    # Circular wrap along W done in-register (lane shifts on the otherwise-idle XLU),
    # so the single store below starts at lane 0 / sublane 0 and lowers to unmasked vst.
    row = jnp.concatenate([x[..., W - p:], x, x[..., :p]], axis=-1)   # (Nb, Cb, H, Wo)
    zeros = jnp.zeros(row.shape[:-2] + (p, Wo), dtype=o_ref.dtype)    # (Nb, Cb, p, Wo)

    # One full-tile store: zero strip / wrapped interior / zero strip along H.
    o_ref[...] = jnp.concatenate([zeros, row, zeros], axis=-2)


def _choose_block(N, C, per_ch_bytes):
    """Pick (Nb, Cb) so each grid step moves ~1-4 MiB of in+out data."""
    MAX_BYTES = 4 << 20   # per-step (single-buffer) in+out budget -> <=8 MiB double-buffered
    MIN_BYTES = 1 << 20   # amortize the ~0.35 us per-grid-step overhead

    # Channel tile: largest divisor of C whose in+out block fits the budget.
    cb = 1
    for d in range(C, 0, -1):
        if C % d == 0 and d * per_ch_bytes <= MAX_BYTES:
            cb = d
            break

    # If a whole image's channel stack fits, group images only as far as needed to reach
    # MIN_BYTES (keeping as many grid steps as possible for pipelining / v7x's 2 cores).
    nb = 1
    if cb == C:
        per_img = C * per_ch_bytes
        for d in range(1, N + 1):
            if N % d != 0:
                continue
            if d * per_img <= MAX_BYTES:
                nb = d
            if d * per_img >= MIN_BYTES:
                break
    return nb, cb


def periodic_padding_2d(x, pad_width):
    """Forward of PeriodicPadding2D. x: (N, C, H, W) -> (N, C, H+2p, W+2p)."""
    if pad_width == 0:
        return x
    p = int(pad_width)
    N, C, H, W = x.shape
    assert 0 < p <= W, f"pad_width must satisfy 0 < pad_width <= W (got {p}, W={W})"
    Ho, Wo = H + 2 * p, W + 2 * p
    itemsize = jnp.dtype(x.dtype).itemsize

    per_ch_bytes = (H * W + Ho * Wo) * itemsize
    Nb, Cb = _choose_block(N, C, per_ch_bytes)

    # Double-buffered in+out blocks plus headroom; keep within [16 MiB, 64 MiB] so the
    # limit is valid on v5e/v6e (128 MiB physical) and v7x (64 MiB physical).
    block_bytes = Nb * Cb * per_ch_bytes
    vmem_limit = int(min(max(2.5 * block_bytes + (1 << 20), 16 << 20), 64 << 20))

    return pl.pallas_call(
        functools.partial(_periodic_pad_kernel, pad=p),
        out_shape=jax.ShapeDtypeStruct((N, C, Ho, Wo), x.dtype),
        grid_spec=pltpu.PrefetchScalarGridSpec(
            num_scalar_prefetch=0,
            grid=(N // Nb, C // Cb),
            in_specs=[pl.BlockSpec((Nb, Cb, H, W), lambda n, c: (n, c, 0, 0))],
            out_specs=pl.BlockSpec((Nb, Cb, Ho, Wo), lambda n, c: (n, c, 0, 0)),
        ),
        compiler_params=pltpu.CompilerParams(
            dimension_semantics=("parallel", "parallel"),
            vmem_limit_bytes=vmem_limit,
        ),
        cost_estimate=pl.CostEstimate(
            flops=0,
            transcendentals=0,
            bytes_accessed=N * C * (H * W + Ho * Wo) * itemsize,
        ),
    )(x)


def _ref_pad(x, p):
    """Pure-JAX reference mirroring the PyTorch forward."""
    if p == 0:
        return x
    r = jnp.concatenate([x[..., -p:], x, x[..., :p]], axis=3)
    return jnp.pad(r, ((0, 0), (0, 0), (p, p), (0, 0)))


if __name__ == "__main__":
    # Small shapes consistent with the module's expected NCHW input.
    N, C, H, W = 2, 4, 16, 16
    pad_width = 1

    key = jax.random.PRNGKey(0)
    x = jax.random.normal(key, (N, C, H, W), dtype=jnp.float32)

    out = jax.block_until_ready(periodic_padding_2d(x, pad_width))
    ref = jax.block_until_ready(_ref_pad(x, pad_width))
    assert out.shape == (N, C, H + 2 * pad_width, W + 2 * pad_width), out.shape
    np.testing.assert_array_equal(np.asarray(out), np.asarray(ref))

    # Second config: larger pad, odd channel count (exercises the tiling chooser / edge widths).
    N2, C2, H2, W2, p2 = 2, 3, 8, 24, 2
    x2 = jax.random.normal(jax.random.PRNGKey(1), (N2, C2, H2, W2), dtype=jnp.float32)
    out2 = jax.block_until_ready(periodic_padding_2d(x2, p2))
    ref2 = jax.block_until_ready(_ref_pad(x2, p2))
    np.testing.assert_array_equal(np.asarray(out2), np.asarray(ref2))

    # pad_width == 0 identity path (matches the module's early return).
    out0 = jax.block_until_ready(periodic_padding_2d(x, 0))
    np.testing.assert_array_equal(np.asarray(out0), np.asarray(x))

    print("KERNEL_OK")
</pallas_src>

<mosaic_0001>
module attributes {stable_mosaic.version = 11 : i64} {
  func.func @_periodic_pad_kernel(%arg0: i32, %arg1: i32, %arg2: memref<2x4x16x16xf32, #tpu.memory_space<vmem>>, %arg3: memref<2x4x18x18xf32, #tpu.memory_space<vmem>>) attributes {dimension_semantics = [#tpu.dimension_semantics<parallel>, #tpu.dimension_semantics<parallel>], iteration_bounds = array<i64: 1, 1>, scalar_prefetch = 0 : i64, scratch_operands = 0 : i64, tpu.core_type = #tpu.core_type<tc>, window_params = [{transform_indices = @transform_0, window_bounds = array<i64: 2, 4, 16, 16>}, {transform_indices = @transform_1, window_bounds = array<i64: 2, 4, 18, 18>}]} {
    %c0 = arith.constant 0 : index
    %c0_0 = arith.constant 0 : index
    %c0_1 = arith.constant 0 : index
    %c0_2 = arith.constant 0 : index
    %0 = vector.load %arg2[%c0, %c0_0, %c0_1, %c0_2] : memref<2x4x16x16xf32, #tpu.memory_space<vmem>>, vector<2x4x16x16xf32>
    %1 = vector.extract_strided_slice %0 {offsets = [0, 0, 0, 15], sizes = [2, 4, 16, 1], strides = [1, 1, 1, 1]} : vector<2x4x16x16xf32> to vector<2x4x16x1xf32>
    %2 = vector.extract_strided_slice %0 {offsets = [0, 0, 0, 0], sizes = [2, 4, 16, 1], strides = [1, 1, 1, 1]} : vector<2x4x16x16xf32> to vector<2x4x16x1xf32>
    %3 = tpu.concatenate %1, %0, %2 in 3 : vector<2x4x16x1xf32>, vector<2x4x16x16xf32>, vector<2x4x16x1xf32> -> vector<2x4x16x18xf32>
    %cst = arith.constant 0.000000e+00 : f32
    %4 = vector.broadcast %cst : f32 to vector<2x4x1x18xf32>
    %5 = tpu.concatenate %4, %3, %4 in 2 : vector<2x4x1x18xf32>, vector<2x4x16x18xf32>, vector<2x4x1x18xf32> -> vector<2x4x18x18xf32>
    %c0_3 = arith.constant 0 : index
    %c0_4 = arith.constant 0 : index
    %c0_5 = arith.constant 0 : index
    %c0_6 = arith.constant 0 : index
    %6 = vector.load %arg3[%c0_3, %c0_4, %c0_5, %c0_6] : memref<2x4x18x18xf32, #tpu.memory_space<vmem>>, vector<2x4x18x18xf32>
    tpu.vector_store %arg3[%c0_3, %c0_4, %c0_5, %c0_6], %5 {strides = array<i32>} : memref<2x4x18x18xf32, #tpu.memory_space<vmem>>, vector<2x4x18x18xf32>,
    return
  }
  func.func @transform_0(%arg0: i32, %arg1: i32) -> (i32, i32, i32, i32) {
    %c0_i32 = arith.constant 0 : i32
    %c0_i32_0 = arith.constant 0 : i32
    %c0_i32_1 = arith.constant 0 : i32
    return %arg0, %arg1, %c0_i32, %c0_i32_0 : i32, i32, i32, i32
  }
  func.func @transform_1(%arg0: i32, %arg1: i32) -> (i32, i32, i32, i32) {
    %c0_i32 = arith.constant 0 : i32
    %c0_i32_0 = arith.constant 0 : i32
    %c0_i32_1 = arith.constant 0 : i32
    return %arg0, %arg1, %c0_i32, %c0_i32_0 : i32, i32, i32, i32
  }
}

</mosaic_0001>

<llo_original>
// kernel: tpu_custom_call.1
$region0: #{tpu_custom_call.1}
  #allocation0 [shape = 'u32[]', space=smem, size = 0x4, offset = 0x4, fixed_abs, tag = 'smem constant byte address 0x4 - core index']
  #allocation1 [shape = 'u32[144,128]{1,0:T(1,128)}', space=vmem, size = 0x12000, scoped, tag = 'internal scratch']
  %s0 = inlined_call_operand.hbm [shape: f32[2,4,16,16], index: 0, kind: input, shape index: {}]
  %s1 = inlined_call_operand.vmem [shape: f32[2,4,18,18], index: 1, kind: output, shape index: {}]
  %s2 = sld [smem:[#allocation0]]
  $region18: #{tpu_custom_call.1} parent=0
    _
  %s4 = ssub.s32 1, %s2
  %s5 = scalar_select 0, %s4, %s2
  $region1: #{tpu_custom_call.1} parent=0
    #allocation2 [shape = 'u8[65536]{0}', space=vmem, size = 0x10000, scoped, tag = 'input window, operand 0, single buffered']
    #allocation3 [shape = 's32[1]{0}', space=sflag, size = 0x4, scoped, tag = 'scoped memory for tpu_custom_call.1']
    %6 = vsyncpa [#allocation3], 0
    // Predicated region
    $region2: #{tpu_custom_call.1} parent=1 // pred_check
      _
    $region3: #{tpu_custom_call.1} parent=1 // pred_check_branch
      %8 = sbr.rel (0) target = $region5
    $region4: #{tpu_custom_call.1} parent=1 // pred_region
      %s10 = ssub.s32 2048, 2048
      %11 = vsyncadd [#allocation3], %s10
      %s12 = sshll.u32 [#allocation2], 4
      %s13 = int_to_ptr.vmem [resolvable:$true] %s12
      %18 = dma.hbm_to_vmem [thread:$0]  %s0, 2048, %s13, [#allocation3], 128, 128, 8
    $region5: #{tpu_custom_call.1} parent=1 // pred_fallthru
      _
    // Predicated region
    $region6: #{tpu_custom_call.1} parent=1 // pred_check
      _
    $region7: #{tpu_custom_call.1} parent=1 // pred_check_branch
      %20 = sbr.rel (0) target = $region9
    $region8: #{tpu_custom_call.1} parent=1 // pred_region
      %21 = dma.done [#allocation3], 2048
    $region9: #{tpu_custom_call.1} parent=1 // pred_fallthru
      _
    %v22 = vld [vmem:[#allocation2] sm:$0xff]
    %v23 = vld [vmem:[#allocation2 + $0x8] sm:$0xff]
    %v24 = vld [vmem:[#allocation2 + $0x10] sm:$0xff]
    %v25 = vld [vmem:[#allocation2 + $0x18] sm:$0xff]
    %v26 = vld [vmem:[#allocation2 + $0x20] sm:$0xff]
    %v27 = vld [vmem:[#allocation2 + $0x28] sm:$0xff]
    %v28 = vld [vmem:[#allocation2 + $0x30] sm:$0xff]
    %v29 = vld [vmem:[#allocation2 + $0x38] sm:$0xff]
    %v30 = vld [vmem:[#allocation2 + $0x40] sm:$0xff]
    %v31 = vld [vmem:[#allocation2 + $0x48] sm:$0xff]
    %v32 = vld [vmem:[#allocation2 + $0x50] sm:$0xff]
    %v33 = vld [vmem:[#allocation2 + $0x58] sm:$0xff]
    %v34 = vld [vmem:[#allocation2 + $0x60] sm:$0xff]
    %v35 = vld [vmem:[#allocation2 + $0x68] sm:$0xff]
    %v36 = vld [vmem:[#allocation2 + $0x70] sm:$0xff]
    %v37 = vld [vmem:[#allocation2 + $0x78] sm:$0xff]
    %54 = vrot.lane.b32.xlu0 %v22, 113
    %v55 = vpop.permute.xlu0 %54
    %56 = vrot.lane.b32.xlu0 %v23, 113
    %v57 = vpop.permute.xlu0 %56
    %58 = vrot.lane.b32.xlu0 %v24, 113
    %v59 = vpop.permute.xlu0 %58
    %60 = vrot.lane.b32.xlu0 %v25, 113
    %v61 = vpop.permute.xlu0 %60
    %62 = vrot.lane.b32.xlu0 %v26, 113
    %v63 = vpop.permute.xlu0 %62
    %64 = vrot.lane.b32.xlu0 %v27, 113
    %v65 = vpop.permute.xlu0 %64
    %66 = vrot.lane.b32.xlu0 %v28, 113
    %v67 = vpop.permute.xlu0 %66
    %68 = vrot.lane.b32.xlu0 %v29, 113
    %v69 = vpop.permute.xlu0 %68
    %70 = vrot.lane.b32.xlu0 %v30, 113
    %v71 = vpop.permute.xlu0 %70
    %72 = vrot.lane.b32.xlu0 %v31, 113
    %v73 = vpop.permute.xlu0 %72
    %74 = vrot.lane.b32.xlu0 %v32, 113
    %v75 = vpop.permute.xlu0 %74
    %76 = vrot.lane.b32.xlu0 %v33, 113
    %v77 = vpop.permute.xlu0 %76
    %78 = vrot.lane.b32.xlu0 %v34, 113
    %v79 = vpop.permute.xlu0 %78
    %80 = vrot.lane.b32.xlu0 %v35, 113
    %v81 = vpop.permute.xlu0 %80
    %82 = vrot.lane.b32.xlu0 %v36, 113
    %v83 = vpop.permute.xlu0 %82
    %84 = vrot.lane.b32.xlu0 %v37, 113
    %v85 = vpop.permute.xlu0 %84
    %102 = vrot.lane.b32.xlu0 %v22, 1
    %v103 = vpop.permute.xlu0 %102
    %104 = vrot.lane.b32.xlu0 %v23, 1
    %v105 = vpop.permute.xlu0 %104
    %106 = vrot.lane.b32.xlu0 %v24, 1
    %v107 = vpop.permute.xlu0 %106
    %108 = vrot.lane.b32.xlu0 %v25, 1
    %v109 = vpop.permute.xlu0 %108
    %110 = vrot.lane.b32.xlu0 %v26, 1
    %v111 = vpop.permute.xlu0 %110
    %112 = vrot.lane.b32.xlu0 %v27, 1
    %v113 = vpop.permute.xlu0 %112
    %114 = vrot.lane.b32.xlu0 %v28, 1
    %v115 = vpop.permute.xlu0 %114
    %116 = vrot.lane.b32.xlu0 %v29, 1
    %v117 = vpop.permute.xlu0 %116
    %118 = vrot.lane.b32.xlu0 %v30, 1
    %v119 = vpop.permute.xlu0 %118
    %120 = vrot.lane.b32.xlu0 %v31, 1
    %v121 = vpop.permute.xlu0 %120
    %122 = vrot.lane.b32.xlu0 %v32, 1
    %v123 = vpop.permute.xlu0 %122
    %124 = vrot.lane.b32.xlu0 %v33, 1
    %v125 = vpop.permute.xlu0 %124
    %126 = vrot.lane.b32.xlu0 %v34, 1
    %v127 = vpop.permute.xlu0 %126
    %128 = vrot.lane.b32.xlu0 %v35, 1
    %v129 = vpop.permute.xlu0 %128
    %130 = vrot.lane.b32.xlu0 %v36, 1
    %v131 = vpop.permute.xlu0 %130
    %132 = vrot.lane.b32.xlu0 %v37, 1
    %v133 = vpop.permute.xlu0 %132
    %150 = vrot.lane.b32.xlu0 %v22, 17
    %v151 = vpop.permute.xlu0 %150
    %152 = vrot.lane.b32.xlu0 %v23, 17
    %v153 = vpop.permute.xlu0 %152
    %154 = vrot.lane.b32.xlu0 %v24, 17
    %v155 = vpop.permute.xlu0 %154
    %156 = vrot.lane.b32.xlu0 %v25, 17
    %v157 = vpop.permute.xlu0 %156
    %158 = vrot.lane.b32.xlu0 %v26, 17
    %v159 = vpop.permute.xlu0 %158
    %160 = vrot.lane.b32.xlu0 %v27, 17
    %v161 = vpop.permute.xlu0 %160
    %162 = vrot.lane.b32.xlu0 %v28, 17
    %v163 = vpop.permute.xlu0 %162
    %164 = vrot.lane.b32.xlu0 %v29, 17
    %v165 = vpop.permute.xlu0 %164
    %166 = vrot.lane.b32.xlu0 %v30, 17
    %v167 = vpop.permute.xlu0 %166
    %168 = vrot.lane.b32.xlu0 %v31, 17
    %v169 = vpop.permute.xlu0 %168
    %170 = vrot.lane.b32.xlu0 %v32, 17
    %v171 = vpop.permute.xlu0 %170
    %172 = vrot.lane.b32.xlu0 %v33, 17
    %v173 = vpop.permute.xlu0 %172
    %174 = vrot.lane.b32.xlu0 %v34, 17
    %v175 = vpop.permute.xlu0 %174
    %176 = vrot.lane.b32.xlu0 %v35, 17
    %v177 = vpop.permute.xlu0 %176
    %178 = vrot.lane.b32.xlu0 %v36, 17
    %v179 = vpop.permute.xlu0 %178
    %180 = vrot.lane.b32.xlu0 %v37, 17
    %v181 = vpop.permute.xlu0 %180
    %vm198 = vcmask 7168
    %v199 = vsel %vm198, %v55, %v103
    %v200 = vsel %vm198, %v57, %v105
    %v201 = vsel %vm198, %v59, %v107
    %v202 = vsel %vm198, %v61, %v109
    %v203 = vsel %vm198, %v63, %v111
    %v204 = vsel %vm198, %v65, %v113
    %v205 = vsel %vm198, %v67, %v115
    %v206 = vsel %vm198, %v69, %v117
    %v207 = vsel %vm198, %v71, %v119
    %v208 = vsel %vm198, %v73, %v121
    %v209 = vsel %vm198, %v75, %v123
    %v210 = vsel %vm198, %v77, %v125
    %v211 = vsel %vm198, %v79, %v127
    %v212 = vsel %vm198, %v81, %v129
    %v213 = vsel %vm198, %v83, %v131
    %v214 = vsel %vm198, %v85, %v133
    %vm215 = vcmask 138240
    %v216 = vsel %vm215, %v199, %v151
    %v217 = vsel %vm215, %v200, %v153
    %v218 = vsel %vm215, %v201, %v155
    %v219 = vsel %vm215, %v202, %v157
    %v220 = vsel %vm215, %v203, %v159
    %v221 = vsel %vm215, %v204, %v161
    %v222 = vsel %vm215, %v205, %v163
    %v223 = vsel %vm215, %v206, %v165
    %v224 = vsel %vm215, %v207, %v167
    %v225 = vsel %vm215, %v208, %v169
    %v226 = vsel %vm215, %v209, %v171
    %v227 = vsel %vm215, %v210, %v173
    %v228 = vsel %vm215, %v211, %v175
    %v229 = vsel %vm215, %v212, %v177
    %v230 = vsel %vm215, %v213, %v179
    %v231 = vsel %vm215, %v214, %v181
    %vm248 = vcmask 1040384
    %v249 = vrot.slane %v216, 7
    %v250 = vrot.slane %v217, 7
    %v251 = vsel %vm248, %v249, %v250
    %v252 = vrot.slane %v218, 7
    %v253 = vrot.slane %v219, 7
    %v254 = vsel %vm248, %v252, %v253
    %v255 = vrot.slane %v220, 7
    %v256 = vrot.slane %v221, 7
    %v257 = vsel %vm248, %v255, %v256
    %v258 = vrot.slane %v222, 7
    %v259 = vrot.slane %v223, 7
    %v260 = vsel %vm248, %v258, %v259
    %v261 = vrot.slane %v224, 7
    %v262 = vrot.slane %v225, 7
    %v263 = vsel %vm248, %v261, %v262
    %v264 = vrot.slane %v226, 7
    %v265 = vrot.slane %v227, 7
    %v266 = vsel %vm248, %v264, %v265
    %v267 = vrot.slane %v228, 7
    %v268 = vrot.slane %v229, 7
    %v269 = vsel %vm248, %v267, %v268
    %v270 = vrot.slane %v230, 7
    %v271 = vrot.slane %v231, 7
    %v272 = vsel %vm248, %v270, %v271
    %v297 = vsel %vm248, 0.0, %v249
    %v298 = vsel %vm248, 0.0, %v252
    %v299 = vsel %vm248, 0.0, %v255
    %v300 = vsel %vm248, 0.0, %v258
    %v301 = vsel %vm248, 0.0, %v261
    %v302 = vsel %vm248, 0.0, %v264
    %v303 = vsel %vm248, 0.0, %v267
    %v304 = vsel %vm248, 0.0, %v270
    %v305 = vsel %vm248, %v250, 0.0
    %v306 = vsel %vm248, %v253, 0.0
    %v307 = vsel %vm248, %v256, 0.0
    %v308 = vsel %vm248, %v259, 0.0
    %v309 = vsel %vm248, %v262, 0.0
    %v310 = vsel %vm248, %v265, 0.0
    %v311 = vsel %vm248, %v268, 0.0
    %v312 = vsel %vm248, %v271, 0.0
    %vm313 = vcmask 146432
    %314 = vst.msk [vmem:[%s1] sm:$0xff] %vm313, %v297
    %315 = vst.msk [vmem:[%s1 + $0x8] sm:$0xff] %vm313, %v251
    %vm316 = vcmask 140288
    %317 = vst.msk [vmem:[%s1 + $0x10] sm:$0x3] %vm316, %v305
    %318 = vst.msk [vmem:[%s1 + $0x18] sm:$0xff] %vm313, %v298
    %319 = vst.msk [vmem:[%s1 + $0x20] sm:$0xff] %vm313, %v254
    %320 = vst.msk [vmem:[%s1 + $0x28] sm:$0x3] %vm316, %v306
    %321 = vst.msk [vmem:[%s1 + $0x30] sm:$0xff] %vm313, %v299
    %322 = vst.msk [vmem:[%s1 + $0x38] sm:$0xff] %vm313, %v257
    %323 = vst.msk [vmem:[%s1 + $0x40] sm:$0x3] %vm316, %v307
    %324 = vst.msk [vmem:[%s1 + $0x48] sm:$0xff] %vm313, %v300
    %325 = vst.msk [vmem:[%s1 + $0x50] sm:$0xff] %vm313, %v260
    %326 = vst.msk [vmem:[%s1 + $0x58] sm:$0x3] %vm316, %v308
    %327 = vst.msk [vmem:[%s1 + $0x60] sm:$0xff] %vm313, %v301
    %328 = vst.msk [vmem:[%s1 + $0x68] sm:$0xff] %vm313, %v263
    %329 = vst.msk [vmem:[%s1 + $0x70] sm:$0x3] %vm316, %v309
    %330 = vst.msk [vmem:[%s1 + $0x78] sm:$0xff] %vm313, %v302
    %331 = vst.msk [vmem:[%s1 + $0x80] sm:$0xff] %vm313, %v266
    %332 = vst.msk [vmem:[%s1 + $0x88] sm:$0x3] %vm316, %v310
    %333 = vst.msk [vmem:[%s1 + $0x90] sm:$0xff] %vm313, %v303
    %334 = vst.msk [vmem:[%s1 + $0x98] sm:$0xff] %vm313, %v269
    %335 = vst.msk [vmem:[%s1 + $0xa0] sm:$0x3] %vm316, %v311
    %336 = vst.msk [vmem:[%s1 + $0xa8] sm:$0xff] %vm313, %v304
    %337 = vst.msk [vmem:[%s1 + $0xb0] sm:$0xff] %vm313, %v272
    %338 = vst.msk [vmem:[%s1 + $0xb8] sm:$0x3] %vm316, %v312
    // Predicated region
    $region10: #{tpu_custom_call.1} parent=1 // pred_check
      _
    $region11: #{tpu_custom_call.1} parent=1 // pred_check_branch
      %340 = sbr.rel (0) target = $region13
    $region12: #{tpu_custom_call.1} parent=1 // pred_region
      _
    $region13: #{tpu_custom_call.1} parent=1 // pred_fallthru
      _
    // Predicated region
    $region14: #{tpu_custom_call.1} parent=1 // pred_check
      _
    $region15: #{tpu_custom_call.1} parent=1 // pred_check_branch
      %342 = sbr.rel (0) target = $region17
    $region16: #{tpu_custom_call.1} parent=1 // pred_region
      _
    $region17: #{tpu_custom_call.1} parent=1 // pred_fallthru
      _
    %343 = vsyncpa [#allocation3], 1

</llo_original>
